<compile_context>
chip_gen: v6e
topology: v6e:2x2x1
jax: 0.10.0
libtpu: 0.0.40
codegen_flags: <defaults>
</compile_context>

<pallas_src>
import functools

import jax
import jax.numpy as jnp
from jax.experimental import pallas as pl
from jax.experimental.pallas import tpu as pltpu

LANE = 128
DEFAULT_SCALE_TILE_ROWS = 8192      # 4 MiB per f32 block (in+out double-buffered = 16 MiB)
DEFAULT_STD_TILE_ROWS = 16384       # 8 MiB per f32 block (input-only double buffer = 16 MiB)
VMEM_LIMIT_BYTES = 32 * 1024 * 1024  # explicit so v5e (16 MiB scoped default) takes big tiles
SMALL_FALLBACK_BYTES = 1 << 15      # < 32 KiB: plain XLA beats a kernel launch
MIN_SPLIT_ROWS = 4096               # above this, force grid >= 2 (both v7x TCs)


def _has_bf16_vpu():
    """v6e/v7x have a bf16 VPU; v5e does not (keep f32 compute there)."""
    try:
        kind = jax.devices()[0].device_kind.lower()
    except Exception:
        return True
    return ("v5 lite" not in kind) and ("v5e" not in kind) and ("v5litepod" not in kind)


def _use_pallas(x):
    n = x.size
    return (n % LANE == 0) and (n * x.dtype.itemsize >= SMALL_FALLBACK_BYTES)


def _lane_view(x):
    """Copy-free reshape of a lane-divisible tensor to (rows, 128)."""
    n = x.size
    return x.reshape(n // LANE, LANE), n


def _pick_tile(rows, tile_rows):
    """Sublane-aligned tile rows + grid size (cdiv coverage).

    - align to 32 rows (f32 (8,128) / bf16 (16,128) / int8 (32,128) vreg packing)
    - for large inputs keep grid >= 2 so the "parallel" axis feeds both v7x cores
    """
    tr = max(32, (tile_rows // 32) * 32)
    if rows > MIN_SPLIT_ROWS:
        half = (((rows + 1) // 2) + 31) // 32 * 32
        tr = min(tr, half)
    if tr >= rows:
        return rows, 1                      # full-extent block (always legal)
    return tr, pl.cdiv(rows, tr)


# ---------------------------------------------------------------------------
# Kernel 1: per-block partial moments (sum, sum of squares) for the std.
# Each grid step writes its own (2, 128) partial slab -> grid axis is
# "parallel" (megacore-shardable on v7x).  Final combine + sqrt in plain JAX.
# Garbage rows of a partial last block are masked out explicitly.
# ---------------------------------------------------------------------------
def _partial_moments_kernel(x_ref, o_ref, *, tile_rows, total_rows, need_mask):
    xb = x_ref[...].astype(jnp.float32)
    if need_mask:
        r = jax.lax.broadcasted_iota(jnp.int32, xb.shape, 0)
        valid = (pl.program_id(0) * tile_rows + r) < total_rows
        xb = jnp.where(valid, xb, 0.0)
    o_ref[0:1, :] = jnp.sum(xb, axis=0, keepdims=True)        # (1, 128)
    o_ref[1:2, :] = jnp.sum(xb * xb, axis=0, keepdims=True)   # (1, 128)


@functools.partial(jax.jit, static_argnames=("tile_rows",))
def compute_std_pallas(x, tile_rows=DEFAULT_STD_TILE_ROWS):
    if not _use_pallas(x):
        # ragged / tiny inputs: single fused XLA pass, no pad+slice HBM traffic
        return jnp.std(x.astype(jnp.float32), ddof=1)

    x2d, n = _lane_view(x)
    rows = x2d.shape[0]
    tr, grid = _pick_tile(rows, tile_rows)
    need_mask = (rows % tr) != 0

    partials = pl.pallas_call(
        functools.partial(_partial_moments_kernel,
                          tile_rows=tr, total_rows=rows, need_mask=need_mask),
        out_shape=jax.ShapeDtypeStruct((grid, 2, LANE), jnp.float32),
        grid_spec=pltpu.PrefetchScalarGridSpec(
            num_scalar_prefetch=0,
            grid=(grid,),
            in_specs=[pl.BlockSpec((tr, LANE), lambda i: (i, 0))],
            out_specs=pl.BlockSpec((None, 2, LANE), lambda i: (i, 0, 0)),
        ),
        compiler_params=pltpu.CompilerParams(
            dimension_semantics=("parallel",),
            vmem_limit_bytes=VMEM_LIMIT_BYTES),
    )(x2d)

    s = jnp.sum(partials[:, 0, :])
    sq = jnp.sum(partials[:, 1, :])
    nf = jnp.float32(n)
    var = (sq - s * s / nf) / (nf - 1.0)
    return jnp.sqrt(jnp.maximum(var, 0.0))


# ---------------------------------------------------------------------------
# Kernel 2: elementwise scale in the input's native dtype.
# The scalar lives in SMEM; reverse takes one scalar reciprocal and multiplies
# (no per-element divide).  Compute happens in bf16 on chips with a bf16 VPU,
# otherwise in f32 (store always casts back to the native dtype).
# Partial last blocks: out-of-bounds writes are dropped by Pallas.
# ---------------------------------------------------------------------------
def _scale_kernel(s_ref, x_ref, o_ref, *, reverse, compute_dtype):
    s = s_ref[0, 0]
    if reverse:
        s = 1.0 / s
    s = s.astype(compute_dtype)
    o_ref[...] = (x_ref[...].astype(compute_dtype) * s).astype(o_ref.dtype)


@functools.partial(jax.jit, static_argnames=("reverse", "tile_rows"))
def apply_scale_pallas(x, scale, reverse=False, tile_rows=DEFAULT_SCALE_TILE_ROWS):
    if not _use_pallas(x):
        # ragged / tiny inputs: one fused XLA op, no pad + slice-back passes
        s = jnp.asarray(scale, jnp.float32)
        xf = x.astype(jnp.float32)
        y = xf / s if reverse else xf * s
        return y.astype(x.dtype)

    orig_shape = x.shape
    x2d, _ = _lane_view(x)
    rows = x2d.shape[0]
    tr, grid = _pick_tile(rows, tile_rows)

    if x.dtype == jnp.bfloat16 and _has_bf16_vpu():
        compute_dtype = jnp.bfloat16
    else:
        compute_dtype = jnp.float32

    s = jnp.asarray(scale, jnp.float32).reshape(1, 1)
    y2d = pl.pallas_call(
        functools.partial(_scale_kernel, reverse=reverse,
                          compute_dtype=compute_dtype),
        out_shape=jax.ShapeDtypeStruct((rows, LANE), x.dtype),
        grid_spec=pltpu.PrefetchScalarGridSpec(
            num_scalar_prefetch=0,
            grid=(grid,),
            in_specs=[
                pl.BlockSpec(memory_space=pltpu.MemorySpace.SMEM),
                pl.BlockSpec((tr, LANE), lambda i: (i, 0)),
            ],
            out_specs=pl.BlockSpec((tr, LANE), lambda i: (i, 0)),
        ),
        compiler_params=pltpu.CompilerParams(
            dimension_semantics=("parallel",),
            vmem_limit_bytes=VMEM_LIMIT_BYTES),
    )(s, x2d)
    return y2d.reshape(orig_shape)


# ---------------------------------------------------------------------------
# Module-equivalent wrapper
# ---------------------------------------------------------------------------
class ScalerPallas:
    def __init__(self, activate=False):
        self.activate = activate
        self.initialized = False
        self.scale_factor = jnp.float32(1.0)

    def init(self, batch):
        self.initialized = True
        if not self.activate:
            return
        self.scale_factor = compute_std_pallas(batch)
        print(f"Scaler: using scale factor: {float(self.scale_factor)}")

    def __call__(self, x, reverse=False):
        if not self.activate:
            return x
        return apply_scale_pallas(x, self.scale_factor, reverse=reverse)


if __name__ == "__main__":
    key = jax.random.PRNGKey(0)
    k1, k2, k3 = jax.random.split(key, 3)

    # Main path: 4x4x64x64 f32 = 256 KiB -> rows=512, lane-divisible -> Pallas kernels
    x = jax.random.normal(k1, (4, 4, 64, 64), dtype=jnp.float32)

    scaler = ScalerPallas(activate=True)
    scaler.init(x)
    y = scaler(x)                        # x * std
    z = scaler(y, reverse=True)          # (x * std) / std
    jax.block_until_ready((y, z))

    ref_std = jnp.std(x, ddof=1)
    assert jnp.allclose(scaler.scale_factor, ref_std, rtol=1e-5, atol=1e-6), (
        scaler.scale_factor, ref_std)
    assert jnp.allclose(y, x * ref_std, rtol=1e-5, atol=1e-6)
    assert jnp.allclose(z, x, rtol=1e-4, atol=1e-5)

    # Multi-block + masked partial-last-block path (tile does not divide rows)
    std_t = compute_std_pallas(x, tile_rows=96)      # rows=512 -> grid=6, last block partial
    assert jnp.allclose(std_t, ref_std, rtol=1e-5, atol=1e-6)
    y_t = apply_scale_pallas(x, std_t, tile_rows=96)
    assert jnp.allclose(y_t, x * ref_std, rtol=1e-5, atol=1e-6)

    # bf16 native-dtype path (bf16 in-vreg compute on v6e/v7x, f32 on v5e)
    xb = x.astype(jnp.bfloat16)
    yb = apply_scale_pallas(xb, ref_std)
    jax.block_until_ready(yb)
    assert yb.dtype == jnp.bfloat16
    assert jnp.allclose(yb.astype(jnp.float32),
                        xb.astype(jnp.float32) * ref_std, rtol=2e-2, atol=2e-2)

    # Small input (2,4,16,16 = 8 KiB): plain-XLA fallback, same semantics
    x_small = jax.random.normal(k2, (2, 4, 16, 16), dtype=jnp.float32)
    s_small = ScalerPallas(activate=True)
    s_small.init(x_small)
    ys = s_small(x_small)
    assert jnp.allclose(ys, x_small * jnp.std(x_small, ddof=1), rtol=1e-5, atol=1e-6)

    # Ragged input (size % 128 != 0): fallback, no pad/slice HBM passes
    x_ragged = jax.random.normal(k3, (7, 11, 5), dtype=jnp.float32)
    std_r = compute_std_pallas(x_ragged)
    assert jnp.allclose(std_r, jnp.std(x_ragged, ddof=1), rtol=1e-5, atol=1e-6)
    yr = apply_scale_pallas(x_ragged, std_r, reverse=True)
    assert jnp.allclose(yr, x_ragged / jnp.std(x_ragged, ddof=1), rtol=1e-4, atol=1e-5)

    # inactive scaler is a passthrough
    passthrough = ScalerPallas(activate=False)
    passthrough.init(x)
    assert jnp.array_equal(passthrough(x), x)

    print("KERNEL_OK")
</pallas_src>

<mosaic_0001>
module attributes {stable_mosaic.version = 11 : i64} {
  func.func @_partial_moments_kernel(%arg0: i32, %arg1: memref<512x128xf32, #tpu.memory_space<vmem>>, %arg2: memref<1x2x128xf32, #tpu.memory_space<vmem>>) attributes {dimension_semantics = [#tpu.dimension_semantics<parallel>], iteration_bounds = array<i64: 1>, scalar_prefetch = 0 : i64, scratch_operands = 0 : i64, tpu.core_type = #tpu.core_type<tc>, window_params = [{transform_indices = @transform_0, window_bounds = array<i64: 512, 128>}, {transform_indices = @transform_1, window_bounds = array<i64: 1, 2, 128>}]} {
    %c0 = arith.constant 0 : index
    %c0_0 = arith.constant 0 : index
    %0 = vector.load %arg1[%c0, %c0_0] : memref<512x128xf32, #tpu.memory_space<vmem>>, vector<512x128xf32>
    %cst = arith.constant dense<0.000000e+00> : vector<128xf32>
    %1 = vector.multi_reduction <add>, %0, %cst [0] : vector<512x128xf32> to vector<128xf32>
    %2 = vector.shape_cast %1 : vector<128xf32> to vector<1x128xf32>
    %c0_1 = arith.constant 0 : index
    %c0_2 = arith.constant 0 : index
    %c0_3 = arith.constant 0 : index
    %3 = vector.load %arg2[%c0_1, %c0_2, %c0_3] : memref<1x2x128xf32, #tpu.memory_space<vmem>>, vector<1x1x128xf32>
    %4 = vector.shape_cast %3 : vector<1x1x128xf32> to vector<1x128xf32>
    %5 = vector.shape_cast %2 : vector<1x128xf32> to vector<1x1x128xf32>
    tpu.vector_store %arg2[%c0_1, %c0_2, %c0_3], %5 {strides = array<i32>} : memref<1x2x128xf32, #tpu.memory_space<vmem>>, vector<1x1x128xf32>,
    %6 = arith.mulf %0, %0 : vector<512x128xf32>
    %cst_4 = arith.constant dense<0.000000e+00> : vector<128xf32>
    %7 = vector.multi_reduction <add>, %6, %cst_4 [0] : vector<512x128xf32> to vector<128xf32>
    %8 = vector.shape_cast %7 : vector<128xf32> to vector<1x128xf32>
    %c0_5 = arith.constant 0 : index
    %c1 = arith.constant 1 : index
    %c0_6 = arith.constant 0 : index
    %9 = vector.load %arg2[%c0_5, %c1, %c0_6] : memref<1x2x128xf32, #tpu.memory_space<vmem>>, vector<1x1x128xf32>
    %10 = vector.shape_cast %9 : vector<1x1x128xf32> to vector<1x128xf32>
    %11 = vector.shape_cast %8 : vector<1x128xf32> to vector<1x1x128xf32>
    tpu.vector_store %arg2[%c0_5, %c1, %c0_6], %11 {strides = array<i32>} : memref<1x2x128xf32, #tpu.memory_space<vmem>>, vector<1x1x128xf32>,
    return
  }
  func.func @transform_0(%arg0: i32) -> (i32, i32) {
    %c0_i32 = arith.constant 0 : i32
    %c0_i32_0 = arith.constant 0 : i32
    return %arg0, %c0_i32 : i32, i32
  }
  func.func @transform_1(%arg0: i32) -> (i32, i32, i32) {
    %c0_i32 = arith.constant 0 : i32
    %c0_i32_0 = arith.constant 0 : i32
    %c0_i32_1 = arith.constant 0 : i32
    return %arg0, %c0_i32, %c0_i32_0 : i32, i32, i32
  }
}

</mosaic_0001>

<llo_original>
// kernel: compute_std_pallas.1
$region0: #{compute_std_pallas.1}
  #allocation0 [shape = 'u32[]', space=smem, size = 0x4, offset = 0x4, fixed_abs, tag = 'smem constant byte address 0x4 - core index']
  #allocation1 [shape = 'u32[144,128]{1,0:T(1,128)}', space=vmem, size = 0x12000, scoped, tag = 'internal scratch']
  %s0 = inlined_call_operand.vmem [shape: f32[512,128], index: 0, kind: input, shape index: {}]
  %s1 = inlined_call_operand.vmem [shape: f32[1,2,128], index: 1, kind: output, shape index: {}]
  %s2 = sld [smem:[#allocation0]]
  $region14: #{compute_std_pallas.1} parent=0
    _
  %s4 = ssub.s32 1, %s2
  %s5 = scalar_select 0, %s4, %s2
  // Predicated region
  $region2: #{compute_std_pallas.1} parent=0 // pred_check
    _
  $region3: #{compute_std_pallas.1} parent=0 // pred_check_branch
    %7 = sbr.rel (0) target = $region5
  $region4: #{compute_std_pallas.1} parent=0 // pred_region
    _
  $region5: #{compute_std_pallas.1} parent=0 // pred_fallthru
    _
  %v8 = vld [vmem:[%s0] sm:$0xff]
  %v9 = vld [vmem:[%s0 + $0x8] sm:$0xff]
  %v10 = vld [vmem:[%s0 + $0x10] sm:$0xff]
  %v11 = vld [vmem:[%s0 + $0x18] sm:$0xff]
  %v12 = vld [vmem:[%s0 + $0x20] sm:$0xff]
  %v13 = vld [vmem:[%s0 + $0x28] sm:$0xff]
  %v14 = vld [vmem:[%s0 + $0x30] sm:$0xff]
  %v15 = vld [vmem:[%s0 + $0x38] sm:$0xff]
  %v16 = vld [vmem:[%s0 + $0x40] sm:$0xff]
  %v17 = vld [vmem:[%s0 + $0x48] sm:$0xff]
  %v18 = vld [vmem:[%s0 + $0x50] sm:$0xff]
  %v19 = vld [vmem:[%s0 + $0x58] sm:$0xff]
  %v20 = vld [vmem:[%s0 + $0x60] sm:$0xff]
  %v21 = vld [vmem:[%s0 + $0x68] sm:$0xff]
  %v22 = vld [vmem:[%s0 + $0x70] sm:$0xff]
  %v23 = vld [vmem:[%s0 + $0x78] sm:$0xff]
  %v24 = vld [vmem:[%s0 + $0x80] sm:$0xff]
  %v25 = vld [vmem:[%s0 + $0x88] sm:$0xff]
  %v26 = vld [vmem:[%s0 + $0x90] sm:$0xff]
  %v27 = vld [vmem:[%s0 + $0x98] sm:$0xff]
  %v28 = vld [vmem:[%s0 + $0xa0] sm:$0xff]
  %v29 = vld [vmem:[%s0 + $0xa8] sm:$0xff]
  %v30 = vld [vmem:[%s0 + $0xb0] sm:$0xff]
  %v31 = vld [vmem:[%s0 + $0xb8] sm:$0xff]
  %v32 = vld [vmem:[%s0 + $0xc0] sm:$0xff]
  %v33 = vld [vmem:[%s0 + $0xc8] sm:$0xff]
  %v34 = vld [vmem:[%s0 + $0xd0] sm:$0xff]
  %v35 = vld [vmem:[%s0 + $0xd8] sm:$0xff]
  %v36 = vld [vmem:[%s0 + $0xe0] sm:$0xff]
  %v37 = vld [vmem:[%s0 + $0xe8] sm:$0xff]
  %v38 = vld [vmem:[%s0 + $0xf0] sm:$0xff]
  %v39 = vld [vmem:[%s0 + $0xf8] sm:$0xff]
  %v40 = vld [vmem:[%s0 + $0x100] sm:$0xff]
  %v41 = vld [vmem:[%s0 + $0x108] sm:$0xff]
  %v42 = vld [vmem:[%s0 + $0x110] sm:$0xff]
  %v43 = vld [vmem:[%s0 + $0x118] sm:$0xff]
  %v44 = vld [vmem:[%s0 + $0x120] sm:$0xff]
  %v45 = vld [vmem:[%s0 + $0x128] sm:$0xff]
  %v46 = vld [vmem:[%s0 + $0x130] sm:$0xff]
  %v47 = vld [vmem:[%s0 + $0x138] sm:$0xff]
  %v48 = vld [vmem:[%s0 + $0x140] sm:$0xff]
  %v49 = vld [vmem:[%s0 + $0x148] sm:$0xff]
  %v50 = vld [vmem:[%s0 + $0x150] sm:$0xff]
  %v51 = vld [vmem:[%s0 + $0x158] sm:$0xff]
  %v52 = vld [vmem:[%s0 + $0x160] sm:$0xff]
  %v53 = vld [vmem:[%s0 + $0x168] sm:$0xff]
  %v54 = vld [vmem:[%s0 + $0x170] sm:$0xff]
  %v55 = vld [vmem:[%s0 + $0x178] sm:$0xff]
  %v56 = vld [vmem:[%s0 + $0x180] sm:$0xff]
  %v57 = vld [vmem:[%s0 + $0x188] sm:$0xff]
  %v58 = vld [vmem:[%s0 + $0x190] sm:$0xff]
  %v59 = vld [vmem:[%s0 + $0x198] sm:$0xff]
  %v60 = vld [vmem:[%s0 + $0x1a0] sm:$0xff]
  %v61 = vld [vmem:[%s0 + $0x1a8] sm:$0xff]
  %v62 = vld [vmem:[%s0 + $0x1b0] sm:$0xff]
  %v63 = vld [vmem:[%s0 + $0x1b8] sm:$0xff]
  %v64 = vld [vmem:[%s0 + $0x1c0] sm:$0xff]
  %v65 = vld [vmem:[%s0 + $0x1c8] sm:$0xff]
  %v66 = vld [vmem:[%s0 + $0x1d0] sm:$0xff]
  %v67 = vld [vmem:[%s0 + $0x1d8] sm:$0xff]
  %v68 = vld [vmem:[%s0 + $0x1e0] sm:$0xff]
  %v69 = vld [vmem:[%s0 + $0x1e8] sm:$0xff]
  %v70 = vld [vmem:[%s0 + $0x1f0] sm:$0xff]
  %v71 = vld [vmem:[%s0 + $0x1f8] sm:$0xff]
  %v72 = vadd.f32 %v8, %v9
  %v73 = vadd.f32 %v72, %v10
  %v74 = vadd.f32 %v73, %v11
  %v75 = vadd.f32 %v74, %v12
  %v76 = vadd.f32 %v75, %v13
  %v77 = vadd.f32 %v76, %v14
  %v78 = vadd.f32 %v77, %v15
  %v79 = vadd.f32 %v78, %v16
  %v80 = vadd.f32 %v79, %v17
  %v81 = vadd.f32 %v80, %v18
  %v82 = vadd.f32 %v81, %v19
  %v83 = vadd.f32 %v82, %v20
  %v84 = vadd.f32 %v83, %v21
  %v85 = vadd.f32 %v84, %v22
  %v86 = vadd.f32 %v85, %v23
  %v87 = vadd.f32 %v86, %v24
  %v88 = vadd.f32 %v87, %v25
  %v89 = vadd.f32 %v88, %v26
  %v90 = vadd.f32 %v89, %v27
  %v91 = vadd.f32 %v90, %v28
  %v92 = vadd.f32 %v91, %v29
  %v93 = vadd.f32 %v92, %v30
  %v94 = vadd.f32 %v93, %v31
  %v95 = vadd.f32 %v94, %v32
  %v96 = vadd.f32 %v95, %v33
  %v97 = vadd.f32 %v96, %v34
  %v98 = vadd.f32 %v97, %v35
  %v99 = vadd.f32 %v98, %v36
  %v100 = vadd.f32 %v99, %v37
  %v101 = vadd.f32 %v100, %v38
  %v102 = vadd.f32 %v101, %v39
  %v103 = vadd.f32 %v102, %v40
  %v104 = vadd.f32 %v103, %v41
  %v105 = vadd.f32 %v104, %v42
  %v106 = vadd.f32 %v105, %v43
  %v107 = vadd.f32 %v106, %v44
  %v108 = vadd.f32 %v107, %v45
  %v109 = vadd.f32 %v108, %v46
  %v110 = vadd.f32 %v109, %v47
  %v111 = vadd.f32 %v110, %v48
  %v112 = vadd.f32 %v111, %v49
  %v113 = vadd.f32 %v112, %v50
  %v114 = vadd.f32 %v113, %v51
  %v115 = vadd.f32 %v114, %v52
  %v116 = vadd.f32 %v115, %v53
  %v117 = vadd.f32 %v116, %v54
  %v118 = vadd.f32 %v117, %v55
  %v119 = vadd.f32 %v118, %v56
  %v120 = vadd.f32 %v119, %v57
  %v121 = vadd.f32 %v120, %v58
  %v122 = vadd.f32 %v121, %v59
  %v123 = vadd.f32 %v122, %v60
  %v124 = vadd.f32 %v123, %v61
  %v125 = vadd.f32 %v124, %v62
  %v126 = vadd.f32 %v125, %v63
  %v127 = vadd.f32 %v126, %v64
  %v128 = vadd.f32 %v127, %v65
  %v129 = vadd.f32 %v128, %v66
  %v130 = vadd.f32 %v129, %v67
  %v131 = vadd.f32 %v130, %v68
  %v132 = vadd.f32 %v131, %v69
  %v133 = vadd.f32 %v132, %v70
  %v134 = vadd.f32 %v133, %v71
  %v135 = vrot.slane %v134, 4
  %v136 = vadd.f32 %v134, %v135
  %v137 = vrot.slane %v136, 2
  %v138 = vadd.f32 %v136, %v137
  %v139 = vrot.slane %v138, 1
  %v140 = vadd.f32 %v138, %v139
  %141 = vst [vmem:[%s1] sm:$0x1] %v140
  %v142 = vmul.f32 %v8, %v8
  %v143 = vmul.f32 %v9, %v9
  %v144 = vmul.f32 %v10, %v10
  %v145 = vmul.f32 %v11, %v11
  %v146 = vmul.f32 %v12, %v12
  %v147 = vmul.f32 %v13, %v13
  %v148 = vmul.f32 %v14, %v14
  %v149 = vmul.f32 %v15, %v15
  %v150 = vmul.f32 %v16, %v16
  %v151 = vmul.f32 %v17, %v17
  %v152 = vmul.f32 %v18, %v18
  %v153 = vmul.f32 %v19, %v19
  %v154 = vmul.f32 %v20, %v20
  %v155 = vmul.f32 %v21, %v21
  %v156 = vmul.f32 %v22, %v22
  %v157 = vmul.f32 %v23, %v23
  %v158 = vmul.f32 %v24, %v24
  %v159 = vmul.f32 %v25, %v25
  %v160 = vmul.f32 %v26, %v26
  %v161 = vmul.f32 %v27, %v27
  %v162 = vmul.f32 %v28, %v28
  %v163 = vmul.f32 %v29, %v29
  %v164 = vmul.f32 %v30, %v30
  %v165 = vmul.f32 %v31, %v31
  %v166 = vmul.f32 %v32, %v32
  %v167 = vmul.f32 %v33, %v33
  %v168 = vmul.f32 %v34, %v34
  %v169 = vmul.f32 %v35, %v35
  %v170 = vmul.f32 %v36, %v36
  %v171 = vmul.f32 %v37, %v37
  %v172 = vmul.f32 %v38, %v38
  %v173 = vmul.f32 %v39, %v39
  %v174 = vmul.f32 %v40, %v40
  %v175 = vmul.f32 %v41, %v41
  %v176 = vmul.f32 %v42, %v42
  %v177 = vmul.f32 %v43, %v43
  %v178 = vmul.f32 %v44, %v44
  %v179 = vmul.f32 %v45, %v45
  %v180 = vmul.f32 %v46, %v46
  %v181 = vmul.f32 %v47, %v47
  %v182 = vmul.f32 %v48, %v48
  %v183 = vmul.f32 %v49, %v49
  %v184 = vmul.f32 %v50, %v50
  %v185 = vmul.f32 %v51, %v51
  %v186 = vmul.f32 %v52, %v52
  %v187 = vmul.f32 %v53, %v53
  %v188 = vmul.f32 %v54, %v54
  %v189 = vmul.f32 %v55, %v55
  %v190 = vmul.f32 %v56, %v56
  %v191 = vmul.f32 %v57, %v57
  %v192 = vmul.f32 %v58, %v58
  %v193 = vmul.f32 %v59, %v59
  %v194 = vmul.f32 %v60, %v60
  %v195 = vmul.f32 %v61, %v61
  %v196 = vmul.f32 %v62, %v62
  %v197 = vmul.f32 %v63, %v63
  %v198 = vmul.f32 %v64, %v64
  %v199 = vmul.f32 %v65, %v65
  %v200 = vmul.f32 %v66, %v66
  %v201 = vmul.f32 %v67, %v67
  %v202 = vmul.f32 %v68, %v68
  %v203 = vmul.f32 %v69, %v69
  %v204 = vmul.f32 %v70, %v70
  %v205 = vmul.f32 %v71, %v71
  %v206 = vadd.f32 %v142, %v143
  %v207 = vadd.f32 %v206, %v144
  %v208 = vadd.f32 %v207, %v145
  %v209 = vadd.f32 %v208, %v146
  %v210 = vadd.f32 %v209, %v147
  %v211 = vadd.f32 %v210, %v148
  %v212 = vadd.f32 %v211, %v149
  %v213 = vadd.f32 %v212, %v150
  %v214 = vadd.f32 %v213, %v151
  %v215 = vadd.f32 %v214, %v152
  %v216 = vadd.f32 %v215, %v153
  %v217 = vadd.f32 %v216, %v154
  %v218 = vadd.f32 %v217, %v155
  %v219 = vadd.f32 %v218, %v156
  %v220 = vadd.f32 %v219, %v157
  %v221 = vadd.f32 %v220, %v158
  %v222 = vadd.f32 %v221, %v159
  %v223 = vadd.f32 %v222, %v160
  %v224 = vadd.f32 %v223, %v161
  %v225 = vadd.f32 %v224, %v162
  %v226 = vadd.f32 %v225, %v163
  %v227 = vadd.f32 %v226, %v164
  %v228 = vadd.f32 %v227, %v165
  %v229 = vadd.f32 %v228, %v166
  %v230 = vadd.f32 %v229, %v167
  %v231 = vadd.f32 %v230, %v168
  %v232 = vadd.f32 %v231, %v169
  %v233 = vadd.f32 %v232, %v170
  %v234 = vadd.f32 %v233, %v171
  %v235 = vadd.f32 %v234, %v172
  %v236 = vadd.f32 %v235, %v173
  %v237 = vadd.f32 %v236, %v174
  %v238 = vadd.f32 %v237, %v175
  %v239 = vadd.f32 %v238, %v176
  %v240 = vadd.f32 %v239, %v177
  %v241 = vadd.f32 %v240, %v178
  %v242 = vadd.f32 %v241, %v179
  %v243 = vadd.f32 %v242, %v180
  %v244 = vadd.f32 %v243, %v181
  %v245 = vadd.f32 %v244, %v182
  %v246 = vadd.f32 %v245, %v183
  %v247 = vadd.f32 %v246, %v184
  %v248 = vadd.f32 %v247, %v185
  %v249 = vadd.f32 %v248, %v186
  %v250 = vadd.f32 %v249, %v187
  %v251 = vadd.f32 %v250, %v188
  %v252 = vadd.f32 %v251, %v189
  %v253 = vadd.f32 %v252, %v190
  %v254 = vadd.f32 %v253, %v191
  %v255 = vadd.f32 %v254, %v192
  %v256 = vadd.f32 %v255, %v193
  %v257 = vadd.f32 %v256, %v194
  %v258 = vadd.f32 %v257, %v195
  %v259 = vadd.f32 %v258, %v196
  %v260 = vadd.f32 %v259, %v197
  %v261 = vadd.f32 %v260, %v198
  %v262 = vadd.f32 %v261, %v199
  %v263 = vadd.f32 %v262, %v200
  %v264 = vadd.f32 %v263, %v201
  %v265 = vadd.f32 %v264, %v202
  %v266 = vadd.f32 %v265, %v203
  %v267 = vadd.f32 %v266, %v204
  %v268 = vadd.f32 %v267, %v205
  %v269 = vrot.slane %v268, 4
  %v270 = vadd.f32 %v268, %v269
  %v271 = vrot.slane %v270, 2
  %v272 = vadd.f32 %v270, %v271
  %v273 = vrot.slane %v272, 1
  %v274 = vadd.f32 %v272, %v273
  %275 = vst [vmem:[%s1 + $0x1] sm:$0x1] %v274
  // Predicated region
  $region6: #{compute_std_pallas.1} parent=0 // pred_check
    _
  $region7: #{compute_std_pallas.1} parent=0 // pred_check_branch
    %277 = sbr.rel (0) target = $region9
  $region8: #{compute_std_pallas.1} parent=0 // pred_region
    _
  $region9: #{compute_std_pallas.1} parent=0 // pred_fallthru
    _
  // Predicated region
  $region10: #{compute_std_pallas.1} parent=0 // pred_check
    _
  $region11: #{compute_std_pallas.1} parent=0 // pred_check_branch
    %279 = sbr.rel (0) target = $region13
  $region12: #{compute_std_pallas.1} parent=0 // pred_region
    _
  $region13: #{compute_std_pallas.1} parent=0 // pred_fallthru
    _

</llo_original>
